<compile_context>
chip_gen: v6e
topology: v6e:2x2x1
jax: 0.10.0
libtpu: 0.0.40
codegen_flags: <defaults>
</compile_context>

<pallas_src>
import jax
import jax.numpy as jnp
from jax import lax
from jax.experimental import pallas as pl
from jax.experimental.pallas import tpu as pltpu


def _round_up(x, m):
    return ((x + m - 1) // m) * m


def _cross_entropy_kernel(logits_ref, labels_ref, out_ref, m_scr, l_scr, p_scr):
    # logits_ref: (TN, TC) input dtype, labels_ref: (TN, 1) int32
    # out_ref:    (1, 8, 128) f32 partials  (flat idx 0 = loss sum, 1 = count)
    # m/l/p_scr:  (TN, 1) f32 running max / softmax denom / picked logit
    k = pl.program_id(1)

    @pl.when(k == 0)
    def _init():
        m_scr[...] = jnp.full_like(m_scr, jnp.finfo(jnp.float32).min)
        l_scr[...] = jnp.zeros_like(l_scr)
        p_scr[...] = jnp.zeros_like(p_scr)

    # Widen in-vreg (keeps all math in f32 -- required on v5e, safe everywhere).
    x = logits_ref[...].astype(jnp.float32)                      # (TN, TC)
    tn, tc = x.shape
    labels = labels_ref[...]                                     # (TN, 1) i32

    # Global class index of each lane in this class tile.
    col_ids = k * tc + lax.broadcasted_iota(jnp.int32, (tn, tc), 1)

    # Online (flash-style) logsumexp update.
    m_prev = m_scr[...]
    m_new = jnp.maximum(m_prev, jnp.max(x, axis=-1, keepdims=True))
    alpha = jnp.exp(m_prev - m_new)
    l_scr[...] = alpha * l_scr[...] + jnp.sum(
        jnp.exp(x - m_new), axis=-1, keepdims=True)
    # Gather the logit at the label via iota-compare + masked sum
    # (no dynamic vector gather on TPU).
    p_scr[...] = p_scr[...] + jnp.sum(
        jnp.where(col_ids == labels, x, 0.0), axis=-1, keepdims=True)
    m_scr[...] = m_new

    @pl.when(k == pl.num_programs(1) - 1)
    def _finalize():
        lse = m_scr[...] + jnp.log(l_scr[...])                   # (TN, 1)
        # Negative labels = ignored (PyTorch ignore_index=-100) or batch padding.
        valid = labels >= 0
        per_example = jnp.where(valid, lse - p_scr[...], 0.0)
        tot = jnp.sum(per_example)
        cnt = jnp.sum(valid.astype(jnp.float32))
        row = lax.broadcasted_iota(jnp.int32, (1, 8, 128), 1)
        lane = lax.broadcasted_iota(jnp.int32, (1, 8, 128), 2)
        flat = row * 128 + lane
        out_ref[...] = jnp.where(flat == 0, tot,
                                 jnp.where(flat == 1, cnt, 0.0))


def fault_loss(source_output, source_label, *, tn=None, tc=None):
    """F.cross_entropy(source_output, source_label), mean reduction.

    source_output: (N, C) float logits (f32 or bf16 -- passed through unchanged)
    source_label : (N,)   int class indices (negative => ignored, as in torch)
    returns scalar float32 loss
    """
    n, c = source_output.shape
    itemsize = jnp.dtype(source_output.dtype).itemsize

    # Class (lane) tile: tile only when C is lane-aligned, else one full-C tile.
    if tc is None:
        tc = c
        if c % 128 == 0:
            for cand in (2048, 1024, 512, 256, 128):
                if c % cand == 0:
                    tc = cand
                    break
    assert c % tc == 0, "class tile must divide C"

    # Batch (sublane) tile: multiple of 8, sized against a modest per-buffer
    # VMEM budget so 2x double-buffered logits tiles fit on every generation
    # (v7x has only 64 MiB physical VMEM).
    if tn is None:
        budget_bytes = 4 * 1024 * 1024
        tn = min(512, max(8, budget_bytes // max(1, tc * itemsize)))
        tn = max(8, (tn // 8) * 8)
        tn = min(tn, _round_up(n, 8))
    assert tn % 8 == 0, "batch tile must be a multiple of 8"

    n_pad = _round_up(n, tn)
    num_row_tiles = n_pad // tn
    num_col_tiles = c // tc

    labels_2d = source_label.astype(jnp.int32).reshape(n, 1)
    logits = source_output
    if n_pad != n:
        logits = jnp.pad(logits, ((0, n_pad - n), (0, 0)))
        labels_2d = jnp.pad(labels_2d, ((0, n_pad - n), (0, 0)),
                            constant_values=-1)  # padded rows -> ignored

    partials = pl.pallas_call(
        _cross_entropy_kernel,
        out_shape=jax.ShapeDtypeStruct((num_row_tiles, 8, 128), jnp.float32),
        grid=(num_row_tiles, num_col_tiles),
        in_specs=[
            pl.BlockSpec((tn, tc), lambda i, k: (i, k)),
            pl.BlockSpec((tn, 1), lambda i, k: (i, 0)),
        ],
        out_specs=pl.BlockSpec((1, 8, 128), lambda i, k: (i, 0, 0)),
        scratch_shapes=[
            pltpu.VMEM((tn, 1), jnp.float32),   # running max
            pltpu.VMEM((tn, 1), jnp.float32),   # running denom
            pltpu.VMEM((tn, 1), jnp.float32),   # picked logit
        ],
        compiler_params=pltpu.CompilerParams(
            dimension_semantics=("parallel", "arbitrary"),
            vmem_limit_bytes=48 * 1024 * 1024,
        ),
        cost_estimate=pl.CostEstimate(
            flops=int(6 * n_pad * c),
            transcendentals=int(n_pad * c),
            bytes_accessed=int(n_pad * c * itemsize + n_pad * 4
                               + num_row_tiles * 8 * 128 * 4),
        ),
    )(logits, labels_2d)

    total = jnp.sum(partials[:, 0, 0])
    count = jnp.sum(partials[:, 0, 1])
    return (total / count).astype(jnp.float32)


def _reference_ce(logits, labels):
    """Plain-JAX F.cross_entropy (mean, ignore_index = any negative label)."""
    logits = logits.astype(jnp.float32)
    lse = jax.nn.logsumexp(logits, axis=-1)
    valid = labels >= 0
    safe = jnp.where(valid, labels, 0)
    picked = jnp.take_along_axis(logits, safe[:, None], axis=-1)[:, 0]
    per = jnp.where(valid, lse - picked, 0.0)
    return jnp.sum(per) / jnp.sum(valid.astype(jnp.float32))


if __name__ == "__main__":
    key = jax.random.PRNGKey(0)
    k1, k2, k3, k4 = jax.random.split(key, 4)

    # Check 1: small single-tile case (matches the original module's usage).
    N, C = 8, 32
    source_output = jax.random.normal(k1, (N, C), dtype=jnp.float32)
    source_label = jax.random.randint(k2, (N,), 0, C, dtype=jnp.int32)
    loss = fault_loss(source_output, source_label)
    jax.block_until_ready(loss)
    ref = _reference_ce(source_output, source_label)
    assert jnp.allclose(loss, ref, atol=1e-5, rtol=1e-5), (loss, ref)

    # Check 2: multi-tile grid — batch padding, class tiling, ignore_index=-100.
    N2, C2 = 20, 256
    logits2 = jax.random.normal(k3, (N2, C2), dtype=jnp.float32)
    labels2 = jax.random.randint(k4, (N2,), 0, C2, dtype=jnp.int32)
    labels2 = labels2.at[3].set(-100)
    loss2 = fault_loss(logits2, labels2, tn=8, tc=128)
    jax.block_until_ready(loss2)
    ref2 = _reference_ce(logits2, labels2)
    assert jnp.allclose(loss2, ref2, atol=1e-5, rtol=1e-5), (loss2, ref2)

    print("KERNEL_OK")
</pallas_src>

<mosaic_0001>
module attributes {stable_mosaic.version = 11 : i64} {
  func.func @_cross_entropy_kernel(%arg0: i32, %arg1: i32, %arg2: memref<8x32xf32, #tpu.memory_space<vmem>>, %arg3: memref<8x1xi32, #tpu.memory_space<vmem>>, %arg4: memref<1x8x128xf32, #tpu.memory_space<vmem>>, %arg5: memref<8x1xf32, #tpu.memory_space<vmem>>, %arg6: memref<8x1xf32, #tpu.memory_space<vmem>>, %arg7: memref<8x1xf32, #tpu.memory_space<vmem>>) attributes {dimension_semantics = [#tpu.dimension_semantics<parallel>, #tpu.dimension_semantics<arbitrary>], iteration_bounds = array<i64: 1, 1>, scalar_prefetch = 0 : i64, scratch_operands = 3 : i64, tpu.core_type = #tpu.core_type<tc>, window_params = [{transform_indices = @transform_0, window_bounds = array<i64: 8, 32>}, {transform_indices = @transform_1, window_bounds = array<i64: 8, 1>}, {transform_indices = @transform_2, window_bounds = array<i64: 1, 8, 128>}]} {
    %c0_i32 = arith.constant 0 : i32
    %0 = arith.cmpi eq, %arg1, %c0_i32 : i32
    %1 = arith.extui %0 : i1 to i32
    %c0_i32_0 = arith.constant 0 : i32
    %2 = arith.cmpi ne, %1, %c0_i32_0 : i32
    scf.if %2 {
      %cst_21 = arith.constant -3.40282347E+38 : f32
      %37 = vector.broadcast %cst_21 : f32 to vector<8x1xf32>
      %c0_22 = arith.constant 0 : index
      %c0_23 = arith.constant 0 : index
      %38 = vector.load %arg5[%c0_22, %c0_23] : memref<8x1xf32, #tpu.memory_space<vmem>>, vector<8x1xf32>
      tpu.vector_store %arg5[%c0_22, %c0_23], %37 {strides = array<i32>} : memref<8x1xf32, #tpu.memory_space<vmem>>, vector<8x1xf32>,
      %cst_24 = arith.constant 0.000000e+00 : f32
      %39 = vector.broadcast %cst_24 : f32 to vector<8x1xf32>
      %c0_25 = arith.constant 0 : index
      %c0_26 = arith.constant 0 : index
      %40 = vector.load %arg6[%c0_25, %c0_26] : memref<8x1xf32, #tpu.memory_space<vmem>>, vector<8x1xf32>
      tpu.vector_store %arg6[%c0_25, %c0_26], %39 {strides = array<i32>} : memref<8x1xf32, #tpu.memory_space<vmem>>, vector<8x1xf32>,
      %cst_27 = arith.constant 0.000000e+00 : f32
      %41 = vector.broadcast %cst_27 : f32 to vector<8x1xf32>
      %c0_28 = arith.constant 0 : index
      %c0_29 = arith.constant 0 : index
      %42 = vector.load %arg7[%c0_28, %c0_29] : memref<8x1xf32, #tpu.memory_space<vmem>>, vector<8x1xf32>
      tpu.vector_store %arg7[%c0_28, %c0_29], %41 {strides = array<i32>} : memref<8x1xf32, #tpu.memory_space<vmem>>, vector<8x1xf32>,
    } else {
    }
    %c0 = arith.constant 0 : index
    %c0_1 = arith.constant 0 : index
    %3 = vector.load %arg2[%c0, %c0_1] : memref<8x32xf32, #tpu.memory_space<vmem>>, vector<8x32xf32>
    %c0_2 = arith.constant 0 : index
    %c0_3 = arith.constant 0 : index
    %4 = vector.load %arg3[%c0_2, %c0_3] : memref<8x1xi32, #tpu.memory_space<vmem>>, vector<8x1xi32>
    %c32_i32 = arith.constant 32 : i32
    %5 = arith.muli %arg1, %c32_i32 : i32
    %6 = tpu.iota {dimensions = array<i32: 1>} : vector<8x32xi32>
    %7 = vector.broadcast %5 : i32 to vector<8x32xi32>
    %8 = arith.addi %7, %6 : vector<8x32xi32>
    %c0_4 = arith.constant 0 : index
    %c0_5 = arith.constant 0 : index
    %9 = vector.load %arg5[%c0_4, %c0_5] : memref<8x1xf32, #tpu.memory_space<vmem>>, vector<8x1xf32>
    %cst = arith.constant dense<0xFF800000> : vector<8xf32>
    %10 = vector.multi_reduction <maximumf>, %3, %cst [1] : vector<8x32xf32> to vector<8xf32>
    %11 = vector.shape_cast %10 : vector<8xf32> to vector<8x1xf32>
    %12 = arith.maximumf %9, %11 : vector<8x1xf32>
    %13 = arith.subf %9, %12 : vector<8x1xf32>
    %14 = math.exp %13 : vector<8x1xf32>
    %c0_6 = arith.constant 0 : index
    %c0_7 = arith.constant 0 : index
    %15 = vector.load %arg6[%c0_6, %c0_7] : memref<8x1xf32, #tpu.memory_space<vmem>>, vector<8x1xf32>
    %16 = arith.mulf %14, %15 : vector<8x1xf32>
    %17 = vector.broadcast %12 : vector<8x1xf32> to vector<8x32xf32>
    %18 = arith.subf %3, %17 : vector<8x32xf32>
    %19 = math.exp %18 : vector<8x32xf32>
    %cst_8 = arith.constant dense<0.000000e+00> : vector<8xf32>
    %20 = vector.multi_reduction <add>, %19, %cst_8 [1] : vector<8x32xf32> to vector<8xf32>
    %21 = vector.shape_cast %20 : vector<8xf32> to vector<8x1xf32>
    %22 = arith.addf %16, %21 : vector<8x1xf32>
    %c0_9 = arith.constant 0 : index
    %c0_10 = arith.constant 0 : index
    %23 = vector.load %arg6[%c0_9, %c0_10] : memref<8x1xf32, #tpu.memory_space<vmem>>, vector<8x1xf32>
    tpu.vector_store %arg6[%c0_9, %c0_10], %22 {strides = array<i32>} : memref<8x1xf32, #tpu.memory_space<vmem>>, vector<8x1xf32>,
    %c0_11 = arith.constant 0 : index
    %c0_12 = arith.constant 0 : index
    %24 = vector.load %arg7[%c0_11, %c0_12] : memref<8x1xf32, #tpu.memory_space<vmem>>, vector<8x1xf32>
    %25 = vector.broadcast %4 : vector<8x1xi32> to vector<8x32xi32>
    %26 = arith.cmpi eq, %8, %25 : vector<8x32xi32>
    %cst_13 = arith.constant 0.000000e+00 : f32
    %27 = vector.broadcast %cst_13 : f32 to vector<8x32xf32>
    %28 = arith.select %26, %3, %27 : vector<8x32xi1>, vector<8x32xf32>
    %cst_14 = arith.constant dense<0.000000e+00> : vector<8xf32>
    %29 = vector.multi_reduction <add>, %28, %cst_14 [1] : vector<8x32xf32> to vector<8xf32>
    %30 = vector.shape_cast %29 : vector<8xf32> to vector<8x1xf32>
    %31 = arith.addf %24, %30 : vector<8x1xf32>
    %c0_15 = arith.constant 0 : index
    %c0_16 = arith.constant 0 : index
    %32 = vector.load %arg7[%c0_15, %c0_16] : memref<8x1xf32, #tpu.memory_space<vmem>>, vector<8x1xf32>
    tpu.vector_store %arg7[%c0_15, %c0_16], %31 {strides = array<i32>} : memref<8x1xf32, #tpu.memory_space<vmem>>, vector<8x1xf32>,
    %c0_17 = arith.constant 0 : index
    %c0_18 = arith.constant 0 : index
    %33 = vector.load %arg5[%c0_17, %c0_18] : memref<8x1xf32, #tpu.memory_space<vmem>>, vector<8x1xf32>
    tpu.vector_store %arg5[%c0_17, %c0_18], %12 {strides = array<i32>} : memref<8x1xf32, #tpu.memory_space<vmem>>, vector<8x1xf32>,
    %c0_i32_19 = arith.constant 0 : i32
    %34 = arith.cmpi eq, %arg1, %c0_i32_19 : i32
    %35 = arith.extui %34 : i1 to i32
    %c0_i32_20 = arith.constant 0 : i32
    %36 = arith.cmpi ne, %35, %c0_i32_20 : i32
    scf.if %36 {
      %c0_21 = arith.constant 0 : index
      %c0_22 = arith.constant 0 : index
      %37 = vector.load %arg5[%c0_21, %c0_22] : memref<8x1xf32, #tpu.memory_space<vmem>>, vector<8x1xf32>
      %c0_23 = arith.constant 0 : index
      %c0_24 = arith.constant 0 : index
      %38 = vector.load %arg6[%c0_23, %c0_24] : memref<8x1xf32, #tpu.memory_space<vmem>>, vector<8x1xf32>
      %39 = math.log %38 : vector<8x1xf32>
      %40 = arith.addf %37, %39 : vector<8x1xf32>
      %c0_i32_25 = arith.constant 0 : i32
      %41 = vector.broadcast %c0_i32_25 : i32 to vector<8x1xi32>
      %42 = arith.cmpi sge, %4, %41 : vector<8x1xi32>
      %c0_26 = arith.constant 0 : index
      %c0_27 = arith.constant 0 : index
      %43 = vector.load %arg7[%c0_26, %c0_27] : memref<8x1xf32, #tpu.memory_space<vmem>>, vector<8x1xf32>
      %44 = arith.subf %40, %43 : vector<8x1xf32>
      %cst_28 = arith.constant 0.000000e+00 : f32
      %45 = vector.broadcast %cst_28 : f32 to vector<8x1xf32>
      %46 = arith.select %42, %44, %45 : vector<8x1xi1>, vector<8x1xf32>
      %47 = vector.shape_cast %46 : vector<8x1xf32> to vector<1x8x1xf32>
      %cst_29 = arith.constant dense<0.000000e+00> : vector<1xf32>
      %48 = vector.multi_reduction <add>, %47, %cst_29 [1, 2] : vector<1x8x1xf32> to vector<1xf32>
      %49 = vector.shape_cast %48 : vector<1xf32> to vector<1x1x1xf32>
      %50 = vector.extract %49[0, 0, 0] : f32 from vector<1x1x1xf32>
      %51 = arith.extui %42 : vector<8x1xi1> to vector<8x1xi32>
      %52 = arith.sitofp %51 : vector<8x1xi32> to vector<8x1xf32>
      %53 = vector.shape_cast %52 : vector<8x1xf32> to vector<1x8x1xf32>
      %cst_30 = arith.constant dense<0.000000e+00> : vector<1xf32>
      %54 = vector.multi_reduction <add>, %53, %cst_30 [1, 2] : vector<1x8x1xf32> to vector<1xf32>
      %55 = vector.shape_cast %54 : vector<1xf32> to vector<1x1x1xf32>
      %56 = vector.extract %55[0, 0, 0] : f32 from vector<1x1x1xf32>
      %57 = tpu.iota {dimensions = array<i32: 1>} : vector<1x8x128xi32>
      %58 = tpu.iota {dimensions = array<i32: 2>} : vector<1x8x128xi32>
      %c128_i32 = arith.constant 128 : i32
      %59 = vector.broadcast %c128_i32 : i32 to vector<1x8x128xi32>
      %60 = arith.muli %57, %59 : vector<1x8x128xi32>
      %61 = arith.addi %60, %58 : vector<1x8x128xi32>
      %c0_i32_31 = arith.constant 0 : i32
      %62 = vector.broadcast %c0_i32_31 : i32 to vector<1x8x128xi32>
      %63 = arith.cmpi eq, %61, %62 : vector<1x8x128xi32>
      %c1_i32 = arith.constant 1 : i32
      %64 = vector.broadcast %c1_i32 : i32 to vector<1x8x128xi32>
      %65 = arith.cmpi eq, %61, %64 : vector<1x8x128xi32>
      %cst_32 = arith.constant 0.000000e+00 : f32
      %66 = vector.broadcast %56 : f32 to vector<1x8x128xf32>
      %67 = vector.broadcast %cst_32 : f32 to vector<1x8x128xf32>
      %68 = arith.select %65, %66, %67 : vector<1x8x128xi1>, vector<1x8x128xf32>
      %69 = vector.broadcast %50 : f32 to vector<1x8x128xf32>
      %70 = arith.select %63, %69, %68 : vector<1x8x128xi1>, vector<1x8x128xf32>
      %c0_33 = arith.constant 0 : index
      %c0_34 = arith.constant 0 : index
      %c0_35 = arith.constant 0 : index
      %71 = vector.load %arg4[%c0_33, %c0_34, %c0_35] : memref<1x8x128xf32, #tpu.memory_space<vmem>>, vector<1x8x128xf32>
      tpu.vector_store %arg4[%c0_33, %c0_34, %c0_35], %70 {strides = array<i32>} : memref<1x8x128xf32, #tpu.memory_space<vmem>>, vector<1x8x128xf32>,
    } else {
    }
    return
  }
  func.func @transform_0(%arg0: i32, %arg1: i32) -> (i32, i32) {
    %c0_i32 = arith.constant 0 : i32
    return %arg0, %arg1 : i32, i32
  }
  func.func @transform_1(%arg0: i32, %arg1: i32) -> (i32, i32) {
    %c0_i32 = arith.constant 0 : i32
    %c0_i32_0 = arith.constant 0 : i32
    return %arg0, %c0_i32 : i32, i32
  }
  func.func @transform_2(%arg0: i32, %arg1: i32) -> (i32, i32, i32) {
    %c0_i32 = arith.constant 0 : i32
    %c0_i32_0 = arith.constant 0 : i32
    %c0_i32_1 = arith.constant 0 : i32
    return %arg0, %c0_i32, %c0_i32_0 : i32, i32, i32
  }
}

</mosaic_0001>

<llo_original>
// kernel: tpu_custom_call.1
$region0: #{tpu_custom_call.1}
  #allocation0 [shape = 'u32[]', space=smem, size = 0x4, offset = 0x4, fixed_abs, tag = 'smem constant byte address 0x4 - core index']
  #allocation1 [shape = 'u32[144,128]{1,0:T(1,128)}', space=vmem, size = 0x12000, scoped, tag = 'internal scratch']
  #allocation2 [shape = 'f32[8,1]{1,0:T(8,128)}', space=vmem, size = 0x1000, scoped, tag = 'scratch operand']
  #allocation3 [shape = 'f32[8,1]{1,0:T(8,128)}', space=vmem, size = 0x1000, scoped, tag = 'scratch operand']
  #allocation4 [shape = 'f32[8,1]{1,0:T(8,128)}', space=vmem, size = 0x1000, scoped, tag = 'scratch operand']
  %s0 = inlined_call_operand.vmem [shape: f32[8,32], index: 0, kind: input, shape index: {}]
  %s1 = inlined_call_operand.vmem [shape: s32[8,1], index: 1, kind: input, shape index: {}]
  %s2 = inlined_call_operand.hbm [shape: f32[1,8,128], index: 2, kind: output, shape index: {}]
  %s3 = sld [smem:[#allocation0]]
  $region26: #{tpu_custom_call.1} parent=0
    _
  %s5 = ssub.s32 1, %s3
  %s6 = scalar_select 0, %s5, %s3
  $region1: #{tpu_custom_call.1} parent=0
    #allocation5 [shape = 'u8[4096]{0}', space=vmem, size = 0x1000, scoped, tag = 'output window, operand 0, single buffered']
    #allocation6 [shape = 's32[1]{0}', space=sflag, size = 0x4, scoped, tag = 'scoped memory for tpu_custom_call.1']
    %7 = vsyncpa [#allocation6], 0
    // Predicated region
    $region2: #{tpu_custom_call.1} parent=1 // pred_check
      _
    $region3: #{tpu_custom_call.1} parent=1 // pred_check_branch
      %9 = sbr.rel (0) target = $region5
    $region4: #{tpu_custom_call.1} parent=1 // pred_region
      _
    $region5: #{tpu_custom_call.1} parent=1 // pred_fallthru
      _
    // Predicated region
    $region6: #{tpu_custom_call.1} parent=1 // pred_check
      _
    $region7: #{tpu_custom_call.1} parent=1 // pred_check_branch
      %11 = sbr.rel (0) target = $region9
    $region8: #{tpu_custom_call.1} parent=1 // pred_region
      _
    $region9: #{tpu_custom_call.1} parent=1 // pred_fallthru
      _
    %p12 = scmp.eq.s32.totalorder 0, 0
    // Predicated region
    $region10: #{tpu_custom_call.1} parent=1 // pred_check
      %p13 = pneg %p12
    $region11: #{tpu_custom_call.1} parent=1 // pred_check_branch
      %15 = sbr.rel (%p13) target = $region13
    $region12: #{tpu_custom_call.1} parent=1 // pred_region
      %vm16 = vcmask 7168
      %17 = vst.msk [vmem:[#allocation2] sm:$0xff] %vm16, -3.4028235e+38
      %18 = vst.msk [vmem:[#allocation3] sm:$0xff] %vm16, 0.0
      %19 = vst.msk [vmem:[#allocation4] sm:$0xff] %vm16, 0.0
    $region13: #{tpu_custom_call.1} parent=1 // pred_fallthru
      _
    %v20 = vld [vmem:[%s0] sm:$0xff]
    %v21 = vld [vmem:[%s1] sm:$0xff]
    %s22 = smul.u32 0, 32
    %v23 = vlaneseq
    %v24 = vand.u32 %v23, 127
    %v25 = vstv %s22
    %v26 = vadd.s32 %v25, %v24
    %v27 = vld [vmem:[#allocation2] sm:$0xff]
    %vm28 = vcmask 261120
    %v29 = vsel %vm28, %v20, -inf
    %30 = vmax.xlane.f32.xlu0 %v29
    %v31 = vpop.xlane.xlu0 %30
    %v32 = vmax.f32 %v27, %v31
    %v33 = vsub.f32 %v27, %v32
    %v34 = vmul.f32 %v33, 1.442695
    %v35 = vpow.pop %v34
    %v36 = vld [vmem:[#allocation3] sm:$0xff]
    %v37 = vmul.f32 %v35, %v36
    %39 = vset.pattern.permute.xlu0 0
    %40 = vperm.xlu0 %39, %v32
    %v41 = vpop.permute.xlu0 %40
    %v43 = vsub.f32 %v20, %v41
    %v44 = vmul.f32 %v43, 1.442695
    %v45 = vpow.pop %v44
    %v46 = vsel %vm28, %v45, 0.0
    %47 = vadd.xlane.f32.xlu0 %v46
    %v48 = vpop.xlane.xlu0 %47
    %v49 = vadd.f32 %v37, %v48
    %vm50 = vcmask 7168
    %51 = vst.msk [vmem:[#allocation3] sm:$0xff] %vm50, %v49
    %v52 = vld [vmem:[#allocation4] sm:$0xff]
    %53 = vset.pattern.permute.xlu0 0
    %54 = vperm.xlu0 %53, %v21
    %v55 = vpop.permute.xlu0 %54
    %vm56 = vcmp.eq.s32.totalorder %v26, %v55
    %v57 = vsel %vm56, %v20, 0.0
    %v58 = vsel %vm28, %v57, 0.0
    %59 = vadd.xlane.f32.xlu0 %v58
    %v60 = vpop.xlane.xlu0 %59
    %v61 = vadd.f32 %v52, %v60
    %62 = vst.msk [vmem:[#allocation4] sm:$0xff] %vm50, %v61
    %63 = vst.msk [vmem:[#allocation2] sm:$0xff] %vm50, %v32
    // Predicated region
    $region14: #{tpu_custom_call.1} parent=1 // pred_check
      %p64 = pneg %p12
    $region15: #{tpu_custom_call.1} parent=1 // pred_check_branch
      %66 = sbr.rel (%p64) target = $region17
    $region16: #{tpu_custom_call.1} parent=1 // pred_region
      %v67 = vld [vmem:[#allocation2] sm:$0xff]
      %v68 = vld [vmem:[#allocation3] sm:$0xff]
      %v69 = vlog2.pop %v68
      %v70 = vmul.f32 %v69, 0.6931472
      %v71 = vadd.f32 %v67, %v70
      %vm72 = vcmp.ge.s32.totalorder %v21, 0
      %v73 = vld [vmem:[#allocation4] sm:$0xff]
      %v74 = vsub.f32 %v71, %v73
      %v75 = vsel %vm72, %v74, 0.0
      %v76 = vsel %vm50, %v75, 0.0
      %77 = vadd.xlane.f32.xlu0 %v76
      %v78 = vpop.xlane.xlu0 %77
      %v79 = vrot.slane %v78, 4
      %v80 = vadd.f32 %v78, %v79
      %v81 = vrot.slane %v80, 2
      %v82 = vadd.f32 %v80, %v81
      %v83 = vrot.slane %v82, 1
      %v84 = vadd.f32 %v82, %v83
      %s85 = vtos %v84
      %v86 = vsel %vm72, 1, 0
      %v87 = vcvt.s32.f32 %v86
      %v88 = vsel %vm50, %v87, 0.0
      %89 = vadd.xlane.f32.xlu0 %v88
      %v90 = vpop.xlane.xlu0 %89
      %v91 = vrot.slane %v90, 4
      %v92 = vadd.f32 %v90, %v91
      %v93 = vrot.slane %v92, 2
      %v94 = vadd.f32 %v92, %v93
      %v95 = vrot.slane %v94, 1
      %v96 = vadd.f32 %v94, %v95
      %s97 = vtos %v96
      %v98 = vlaneseq
      %v99 = vshrl.u32 %v98, 7
      %v100 = vmul.u32 %v99, 128
      %v101 = vadd.s32 %v100, %v24
      %vm102 = vcmp.eq.s32.totalorder %v101, 0
      %vm103 = vcmp.eq.s32.totalorder %v101, 1
      %v104 = vstv %s97
      %v105 = vsel %vm103, %v104, 0.0
      %v106 = vstv %s85
      %v107 = vsel %vm102, %v106, %v105
      %108 = vst [vmem:[#allocation5] sm:$0xff] %v107
    $region17: #{tpu_custom_call.1} parent=1 // pred_fallthru
      _
    // Predicated region
    $region18: #{tpu_custom_call.1} parent=1 // pred_check
      _
    $region19: #{tpu_custom_call.1} parent=1 // pred_check_branch
      %110 = sbr.rel (0) target = $region21
    $region20: #{tpu_custom_call.1} parent=1 // pred_region
      %s112 = ssub.s32 128, 128
      %113 = vsyncadd [#allocation6], %s112
      %s115 = sshll.u32 [#allocation5], 4
      %s116 = int_to_ptr.vmem [resolvable:$true] %s115
      %118 = dma.vmem_to_hbm [thread:$0]  %s116, 128, %s2, [#allocation6]
    $region21: #{tpu_custom_call.1} parent=1 // pred_fallthru
      _
    // Predicated region
    $region22: #{tpu_custom_call.1} parent=1 // pred_check
      _
    $region23: #{tpu_custom_call.1} parent=1 // pred_check_branch
      %120 = sbr.rel (0) target = $region25
    $region24: #{tpu_custom_call.1} parent=1 // pred_region
      %121 = dma.done [#allocation6], 128
    $region25: #{tpu_custom_call.1} parent=1 // pred_fallthru
      _
    %122 = vsyncpa [#allocation6], 1

</llo_original>
